<compile_context>
chip_gen: v5e
topology: v5e:2x2
jax: 0.10.0
libtpu: 0.0.40
codegen_flags: <defaults>
</compile_context>

<pallas_src>
import functools

import numpy as np
import jax
import jax.numpy as jnp
from jax.experimental import pallas as pl
from jax.experimental.pallas import tpu as pltpu


def _graph_conv_kernel(w_ref, x_ref, o_ref):
    # w_ref : (K*C, C)       fused spectral weight (resident across the grid)
    # x_ref : (1, C, Tt)     signal block for (batch b, time tile t)
    # o_ref : (1, K*C, Tt)   output block (lane-dense)
    y = jnp.dot(w_ref[...], x_ref[0],
                preferred_element_type=jnp.float32)        # (K*C, Tt), f32 acc
    o_ref[0] = jnp.maximum(y, 0.0).astype(o_ref.dtype)     # ReLU, single store


def _pick_t_tile(T, B, cap=4096):
    """Largest multiple-of-128 divisor of T (<= cap).  When B == 1, keep the
    tile <= T/2 so the grid has >= 2 parallel cells (v7x has 2 TensorCores)."""
    if T % 128 != 0:
        return T                               # single full-width tile
    limit = min(T, cap)
    if B == 1 and T >= 256:
        limit = min(limit, T // 2)
    best = 128
    for cand in range(128, limit + 1, 128):
        if T % cand == 0:
            best = cand
    return best


@functools.partial(jax.jit, static_argnames=("t_tile",))
def _graph_conv_apply(w_fused, x3d, *, t_tile):
    """w_fused: (K*C, C), x3d: (B, C, T)  ->  (B, K, C, T) float32."""
    KC, C = w_fused.shape
    B, _, T = x3d.shape
    K = KC // C
    num_t = T // t_tile

    out_flat = pl.pallas_call(
        _graph_conv_kernel,
        out_shape=jax.ShapeDtypeStruct((B, KC, T), jnp.float32),
        grid_spec=pltpu.PrefetchScalarGridSpec(
            num_scalar_prefetch=0,
            grid=(B, num_t),
            in_specs=[
                pl.BlockSpec((KC, C), lambda b, t: (0, 0)),            # W (resident)
                pl.BlockSpec((1, C, t_tile), lambda b, t: (b, 0, t)),  # x block
            ],
            out_specs=pl.BlockSpec((1, KC, t_tile), lambda b, t: (b, 0, t)),
        ),
        compiler_params=pltpu.CompilerParams(
            dimension_semantics=("parallel", "parallel")),
    )(w_fused, x3d)
    # Contiguous split of the K*C axis -> free XLA reshape.
    return out_flat.reshape(B, K, C, T)


def prepare_spectral_weight(adjacency, graph_kernel, *, compute_dtype=jnp.bfloat16):
    """Once-per-adjacency precompute of W = stack_k(E @ diag(g_k) @ E^T).

    Mirrors MyGraphConvolution.kernel exactly.  Returns a (K*C, C) array in
    `compute_dtype`.  Callers should cache this per adjacency.
    """
    K, _, C = graph_kernel.shape
    # TODO(synk): torch.linalg.eig of the (non-symmetric) L has no Pallas/TPU
    # equivalent; the eigendecomposition runs on host with numpy, once per adjacency.
    A = np.asarray(adjacency, dtype=np.float32)
    D = A.sum(axis=0)                      # torch.sum(adjacency, dim=0)
    L = D - A                              # broadcast: L[i, j] = D[j] - A[i, j]
    _e_vales, e_vets = np.linalg.eig(L)
    e_vets = np.real(e_vets).astype(np.float32)

    evets = jnp.asarray(e_vets)                                   # (C, C)
    gk = jnp.asarray(graph_kernel, dtype=jnp.float32).reshape(K, C)
    # W[k, i, l] = sum_j E[i, j] * g_k[j] * E[l, j]  ==  E @ diag(g_k) @ E^T
    w = jnp.einsum('ij,kj,lj->kil', evets, gk, evets)             # (K, C, C), f32
    return w.reshape(K * C, C).astype(compute_dtype)


def my_graph_convolution_forward(x, adjacency, graph_kernel, *, t_tile=None,
                                 compute_dtype=jnp.bfloat16):
    """x: (B,1,C,T), adjacency: (C,C), graph_kernel: (K,1,C).

    Returns (out, []) with out of shape (B, K, C, T) f32, matching the module.
    """
    B = x.shape[0]
    C = graph_kernel.shape[-1]
    T = x.shape[-1]

    w_fused = prepare_spectral_weight(adjacency, graph_kernel,
                                      compute_dtype=compute_dtype)
    x3d = jnp.asarray(x).reshape(B, C, T).astype(compute_dtype)

    if t_tile is None:
        t_tile = _pick_t_tile(T, B)
    assert T % t_tile == 0, "T must be divisible by the time tile"

    out = _graph_conv_apply(w_fused, x3d, t_tile=t_tile)
    return out, []


if __name__ == "__main__":
    # Small shapes consistent with the module; T is a multiple of 128 so stores
    # are lane-dense and the B=2 grid gives two parallel cells.
    B, C, K, T = 2, 16, 4, 128

    key = jax.random.PRNGKey(0)
    k1, k2, k3 = jax.random.split(key, 3)

    # Deterministic xavier_normal-style init of graph_kernel, shape (K, 1, C).
    fan_in, fan_out = 1 * C, K * C
    std = float(np.sqrt(2.0 / (fan_in + fan_out)))
    graph_kernel = jax.random.normal(k1, (K, 1, C), dtype=jnp.float32) * std

    # Symmetric non-negative adjacency (typical EEG connectivity matrix).
    a = jax.random.uniform(k2, (C, C), dtype=jnp.float32)
    adjacency = (a + a.T) * 0.5

    x = jax.random.normal(k3, (B, 1, C, T), dtype=jnp.float32)

    out, empty = my_graph_convolution_forward(x, adjacency, graph_kernel)
    out = jax.block_until_ready(out)

    # Reference (plain numpy, mirrors the torch code path exactly, f32 throughout).
    A = np.asarray(adjacency)
    D = A.sum(axis=0)
    L = D - A
    _, evn = np.linalg.eig(L)
    evn = np.real(evn).astype(np.float32)
    gk = np.asarray(graph_kernel)                         # (K, 1, C)
    I = np.eye(C, dtype=np.float32)
    adj = evn @ (gk * I) @ evn.T                          # (K, C, C)
    ref = np.maximum(adj[None] @ np.asarray(x), 0.0)      # (B, K, C, T)

    # Single bf16 matmul with f32 accumulation vs. full-f32 numpy reference.
    np.testing.assert_allclose(np.asarray(out), ref, rtol=3e-2, atol=3e-2)

    assert out.shape == (B, K, C, T)
    assert empty == []
    print("KERNEL_OK")
</pallas_src>

<mosaic_0001>
module attributes {stable_mosaic.version = 11 : i64} {
  func.func @_graph_conv_kernel(%arg0: i32, %arg1: i32, %arg2: memref<64x16xbf16, #tpu.memory_space<vmem>>, %arg3: memref<1x16x128xbf16, #tpu.memory_space<vmem>>, %arg4: memref<1x64x128xf32, #tpu.memory_space<vmem>>) attributes {dimension_semantics = [#tpu.dimension_semantics<parallel>, #tpu.dimension_semantics<parallel>], iteration_bounds = array<i64: 2, 1>, scalar_prefetch = 0 : i64, scratch_operands = 0 : i64, tpu.core_type = #tpu.core_type<tc>, window_params = [{pipeline_mode = #tpu.pipeline_mode<synchronous>, transform_indices = @transform_0, window_bounds = array<i64: 64, 16>}, {transform_indices = @transform_1, window_bounds = array<i64: 1, 16, 128>}, {transform_indices = @transform_2, window_bounds = array<i64: 1, 64, 128>}]} {
    %c0 = arith.constant 0 : index
    %c0_0 = arith.constant 0 : index
    %0 = vector.load %arg2[%c0, %c0_0] : memref<64x16xbf16, #tpu.memory_space<vmem>>, vector<64x16xbf16>
    %c0_1 = arith.constant 0 : index
    %c0_2 = arith.constant 0 : index
    %c0_3 = arith.constant 0 : index
    %1 = vector.load %arg3[%c0_1, %c0_2, %c0_3] : memref<1x16x128xbf16, #tpu.memory_space<vmem>>, vector<1x16x128xbf16>
    %2 = vector.shape_cast %1 : vector<1x16x128xbf16> to vector<16x128xbf16>
    %cst = arith.constant dense<0.000000e+00> : vector<64x128xf32>
    %3 = tpu.matmul %0, %2, %cst {dimension_numbers = #tpu.dot_dimension_numbers<[1], [0], [0], [1], [0, 0, 1, 1], [], []>} : vector<64x16xbf16>, vector<16x128xbf16>, vector<64x128xf32> -> vector<64x128xf32>
    %cst_4 = arith.constant 0.000000e+00 : f32
    %4 = vector.broadcast %cst_4 : f32 to vector<64x128xf32>
    %5 = arith.maximumf %3, %4 : vector<64x128xf32>
    %c0_5 = arith.constant 0 : index
    %c0_6 = arith.constant 0 : index
    %c0_7 = arith.constant 0 : index
    %6 = vector.load %arg4[%c0_5, %c0_6, %c0_7] : memref<1x64x128xf32, #tpu.memory_space<vmem>>, vector<1x64x128xf32>
    %7 = vector.shape_cast %6 : vector<1x64x128xf32> to vector<64x128xf32>
    %8 = vector.shape_cast %5 : vector<64x128xf32> to vector<1x64x128xf32>
    tpu.vector_store %arg4[%c0_5, %c0_6, %c0_7], %8 {strides = array<i32>} : memref<1x64x128xf32, #tpu.memory_space<vmem>>, vector<1x64x128xf32>,
    return
  }
  func.func @transform_0(%arg0: i32, %arg1: i32) -> (i32, i32) {
    %c0_i32 = arith.constant 0 : i32
    %c0_i32_0 = arith.constant 0 : i32
    %c0_i32_1 = arith.constant 0 : i32
    return %c0_i32, %c0_i32_0 : i32, i32
  }
  func.func @transform_1(%arg0: i32, %arg1: i32) -> (i32, i32, i32) {
    %c0_i32 = arith.constant 0 : i32
    %c0_i32_0 = arith.constant 0 : i32
    return %arg0, %c0_i32, %arg1 : i32, i32, i32
  }
  func.func @transform_2(%arg0: i32, %arg1: i32) -> (i32, i32, i32) {
    %c0_i32 = arith.constant 0 : i32
    %c0_i32_0 = arith.constant 0 : i32
    return %arg0, %c0_i32, %arg1 : i32, i32, i32
  }
}

</mosaic_0001>

<llo_original>
// kernel: _graph_conv_apply.1
$region0: #{_graph_conv_apply.1}
  #allocation0 [shape = 'u32[]', space=smem, size = 0x4, offset = 0x4, fixed_abs, tag = 'smem constant byte address 0x4 - core index']
  #allocation1 [shape = 'u32[72,128]{1,0:T(1,128)}', space=vmem, size = 0x9000, scoped, tag = 'internal scratch']
  %s0 = inlined_call_operand.vmem [shape: bf16[64,16], index: 0, kind: input, shape index: {}]
  %s1 = inlined_call_operand.vmem [shape: bf16[2,16,128], index: 1, kind: input, shape index: {}]
  %s2 = inlined_call_operand.hbm [shape: f32[2,64,128], index: 2, kind: output, shape index: {}]
  %s3 = sld [smem:[#allocation0]]
  $region41: #{_graph_conv_apply.1} parent=0
    _
  %s5 = ssub.s32 1, %s3
  %s6 = scalar_select 0, %s5, %s3
  $region1: #{_graph_conv_apply.1} parent=0
    #allocation2 [shape = 'u8[65536]{0}', space=vmem, size = 0x10000, scoped, tag = 'output window, operand 0']
    #allocation3 [shape = 's32[2]{0}', space=sflag, size = 0x8, scoped, tag = 'scoped memory for _graph_conv_apply.1']
    %7 = vsyncpa [#allocation3], 0
    %s8 = scalar_lea.sflag [#allocation3], 1
    %9 = vsyncpa %s8, 0
    loop: start=0, step=1, limit=4
    $region2: #{_graph_conv_apply.1} parent=1 // loop_pre_header
      _
    $region3: #{_graph_conv_apply.1} parent=1 // loop_header
      %s11 = sphi 0, %s15
      %p12 = scmp.ge.s32.totalorder %s11, 4
      %s18 = sphi 0, %s30
      %s19 = sphi 0, %s26
      %s20 = sphi 0, %s18
      %s21 = sphi 0, %s19
      %s22 = sphi 0, %s20
      %s23 = sphi 0, %s21
      %s31 = sphi 0, %s31
      %s33 = sphi 0, %s31
      %s34 = sphi 0, %s33
      %s48 = sphi 0, %s34
      %s56 = sphi 0, %s58
      %s59 = sphi 0, %s56
      %s60 = sphi 0, %s59
      %s76 = sphi 0, %s60
      %s84 = sphi 0, %s86
      %s87 = sphi 0, %s84
      %s88 = sphi 0, %s87
      %s104 = sphi 0, %s88
    $region4: #{_graph_conv_apply.1} parent=1 // loop_header_branch
      %14 = sbr.rel (%p12) target = $region8
    $region5: #{_graph_conv_apply.1} parent=1 // loop_body
      %s16 = ssub.s32 %s11, 1
      %s17 = ssub.s32 %s11, 2
      %s24 = sadd.s32 1, %s19
      %p25 = scmp.ge.s32.totalorder %s24, 1
      %s26 = scalar_select %p25, 0, %s24
      %s27 = sadd.s32 1, %s18
      %s28 = scalar_select %p25, %s27, %s18
      %p29 = scmp.ge.s32.totalorder %s28, 2
      %s30 = scalar_select %p29, 0, %s28
      %s32 = sadd.s32 %s31, 1
      %p35 = scmp.eq.s32.totalorder %s11, 1
      %p36 = scmp.ne.s32.totalorder %s31, %s33
      %p37 = scmp.eq.s32.totalorder %s11, 0
      %p38 = por %p36, %p37
      %p39 = scmp.ne.s32.totalorder %s31, %s33
      %p40 = scmp.eq.s32.totalorder %s16, 1
      %p41 = por %p39, %p40
      %p42 = scmp.ne.s32.totalorder %s33, %s34
      %p43 = scmp.eq.s32.totalorder %s16, 0
      %p44 = por %p42, %p43
      %p45 = scmp.ne.s32.totalorder %s33, %s34
      %p46 = scmp.eq.s32.totalorder %s17, 1
      %p47 = por %p45, %p46
      %p49 = scmp.ne.s32.totalorder %s34, %s48
      %p50 = scmp.eq.s32.totalorder %s17, 0
      %p51 = por %p49, %p50
      %s52 = ssub.s32 %s18, %s30
      %s53 = ssub.s32 %s19, %s26
      %s54 = sor.u32 %s52, %s53
      %p55 = scmp.eq.s32.totalorder %s54, 0
      %s57 = sadd.s32 %s56, 1
      %s58 = scalar_select %p55, %s56, %s57
      %p61 = pneg %p55
      %p62 = scmp.eq.s32.totalorder %s11, 1
      %p63 = por %p61, %p62
      %p64 = scmp.ne.s32.totalorder %s56, %s59
      %p65 = scmp.eq.s32.totalorder %s11, 0
      %p66 = por %p64, %p65
      %p67 = scmp.ne.s32.totalorder %s56, %s59
      %p68 = scmp.eq.s32.totalorder %s16, 1
      %p69 = por %p67, %p68
      %p70 = scmp.ne.s32.totalorder %s59, %s60
      %p71 = scmp.eq.s32.totalorder %s16, 0
      %p72 = por %p70, %p71
      %p73 = scmp.ne.s32.totalorder %s59, %s60
      %p74 = scmp.eq.s32.totalorder %s17, 1
      %p75 = por %p73, %p74
      %p77 = scmp.ne.s32.totalorder %s60, %s76
      %p78 = scmp.eq.s32.totalorder %s17, 0
      %p79 = por %p77, %p78
      %s80 = ssub.s32 %s18, %s30
      %s81 = ssub.s32 %s19, %s26
      %s82 = sor.u32 %s80, %s81
      %p83 = scmp.eq.s32.totalorder %s82, 0
      %s85 = sadd.s32 %s84, 1
      %s86 = scalar_select %p83, %s84, %s85
      %p89 = pneg %p83
      %p90 = scmp.eq.s32.totalorder %s11, 1
      %p91 = por %p89, %p90
      %p92 = scmp.ne.s32.totalorder %s84, %s87
      %p93 = scmp.eq.s32.totalorder %s11, 0
      %p94 = por %p92, %p93
      %p95 = scmp.ne.s32.totalorder %s84, %s87
      %p96 = scmp.eq.s32.totalorder %s16, 1
      %p97 = por %p95, %p96
      %p98 = scmp.ne.s32.totalorder %s87, %s88
      %p99 = scmp.eq.s32.totalorder %s16, 0
      %p100 = por %p98, %p99
      %p101 = scmp.ne.s32.totalorder %s87, %s88
      %p102 = scmp.eq.s32.totalorder %s17, 1
      %p103 = por %p101, %p102
      %p105 = scmp.ne.s32.totalorder %s88, %s104
      %p106 = scmp.eq.s32.totalorder %s17, 0
      %p107 = por %p105, %p106
      %p108 = scmp.le.s32.totalorder 1, %s11
      %p109 = scmp.lt.s32.totalorder %s11, 3
      %p110 = pnand %p108, %p109
      %p111 = pneg %p110
      // Predicated region
      $region9: #{_graph_conv_apply.1} parent=5 // pred_check
        _
      $region10: #{_graph_conv_apply.1} parent=5 // pred_check_branch
        %113 = sbr.rel (%p110) target = $region12
      $region11: #{_graph_conv_apply.1} parent=5 // pred_region
        %s114 = ssub.s32 %s11, 1
        // Predicated region
        $region13: #{_graph_conv_apply.1} parent=11 // pred_check
          %p115 = pneg %p44
        $region14: #{_graph_conv_apply.1} parent=11 // pred_check_branch
          %117 = sbr.rel (%p115) target = $region16
        $region15: #{_graph_conv_apply.1} parent=11 // pred_region
          _
        $region16: #{_graph_conv_apply.1} parent=11 // pred_fallthru
          _
      $region12: #{_graph_conv_apply.1} parent=5 // pred_fallthru
        _
      %p118 = scmp.lt.s32.totalorder %s11, 2
      // Predicated region
      $region17: #{_graph_conv_apply.1} parent=5 // pred_check
        %p119 = pneg %p118
      $region18: #{_graph_conv_apply.1} parent=5 // pred_check_branch
        %121 = sbr.rel (%p119) target = $region20
      $region19: #{_graph_conv_apply.1} parent=5 // pred_region
        // Predicated region
        $region21: #{_graph_conv_apply.1} parent=19 // pred_check
          %p122 = pneg %p66
        $region22: #{_graph_conv_apply.1} parent=19 // pred_check_branch
          %124 = sbr.rel (%p122) target = $region24
        $region23: #{_graph_conv_apply.1} parent=19 // pred_region
          %p125 = scmp.lt.s32.totalorder %s18, 1
          %s126 = scalar_select %p125, %s18, 1
          %p127 = scmp.lt.s32.totalorder %s19, 0
          %s128 = scalar_select %p127, %s19, 0
          %s129 = smul.addr %s126, 2
          %s130 = sadd.s32 %s128, %s129
          %s131 = smul.addr %s130, 4
          %s132 = scalar_lea.vmem %s1, %s131
        $region24: #{_graph_conv_apply.1} parent=19 // pred_fallthru
          _
      $region20: #{_graph_conv_apply.1} parent=5 // pred_fallthru
        _
      %p133 = scmp.le.s32.totalorder 1, %s11
      %p134 = scmp.lt.s32.totalorder %s11, 3
      %p135 = pnand %p133, %p134
      %p136 = pneg %p135
      // Predicated region
      $region25: #{_graph_conv_apply.1} parent=5 // pred_check
        _
      $region26: #{_graph_conv_apply.1} parent=5 // pred_check_branch
        %138 = sbr.rel (%p135) target = $region28
      $region27: #{_graph_conv_apply.1} parent=5 // pred_region
        %s139 = ssub.s32 %s11, 1
        %p140 = pneg %p44
        %p141 = pneg %p41
        %p142 = scmp.lt.s32.totalorder %s20, 1
        %s143 = scalar_select %p142, %s20, 1
        %p144 = scmp.lt.s32.totalorder %s21, 0
        %s145 = scalar_select %p144, %s21, 0
        %s146 = smul.addr %s143, 2
        %s147 = sadd.s32 %s145, %s146
        %s148 = smul.addr %s147, 4
        %s149 = scalar_lea.vmem %s1, %s148
        %p150 = pneg %p72
        %p151 = pneg %p69
        %p152 = pneg %p100
        %p153 = pneg %p97
        %s154 = sand.u32 %s87, 1
        %s155 = scalar_lea.sflag [#allocation3], %s154
        %s156 = sand.u32 %s87, 1
        %s157 = smul.addr %s156, 64
        %s158 = scalar_lea.vmem [#allocation2], %s157
        %p159 = scmp.lt.s32.totalorder %s20, 1
        %s160 = scalar_select %p159, %s20, 1
        %p161 = scmp.lt.s32.totalorder %s21, 0
        %s162 = scalar_select %p161, %s21, 0
        %s163 = smul.addr %s160, 2
        %s164 = sadd.s32 %s162, %s163
        %s165 = smul.addr %s164, 4
        %s166 = scalar_lea.vmem %s1, %s165
        %v168 = vld [vmem:[%s0] sm:$0xf]
        %v169 = vld [vmem:[%s0 + $0x4] sm:$0xf]
        %v170 = vld [vmem:[%s0 + $0x8] sm:$0xf]
        %v171 = vld [vmem:[%s0 + $0xc] sm:$0xf]
        %v172 = vld [vmem:[%s0 + $0x10] sm:$0xf]
        %v173 = vld [vmem:[%s0 + $0x14] sm:$0xf]
        %v174 = vld [vmem:[%s0 + $0x18] sm:$0xf]
        %v175 = vld [vmem:[%s0 + $0x1c] sm:$0xf]
        %v176 = vld [vmem:[%s166] sm:$0xf]
        %v177 = vld [vmem:[%s166 + $0x4] sm:$0xf]
        %v186 = vunpack.c.l.b16 %v168
        %v187 = vunpack.c.l.b16 %v169
        %v188 = vunpack.c.l.b16 %v170
        %v189 = vunpack.c.l.b16 %v171
        %v190 = vunpack.c.l.b16 %v172
        %v191 = vunpack.c.l.b16 %v173
        %v192 = vunpack.c.l.b16 %v174
        %v193 = vunpack.c.l.b16 %v175
        %v194 = vpack.c.b16 %v187, %v186
        %v195 = vpack.c.b16 %v189, %v188
        %v196 = vpack.c.b16 %v191, %v190
        %v197 = vpack.c.b16 %v193, %v192
        %v200 = vunpack.c.l.b16 %v176
        %v201 = vunpack.c.l.b16 %v177
        %v202 = vpack.c.b16 %v201, %v200
        %vm204 = vcmask 130048
        %v206 = vsel %vm204, %v194, 0
        %v209 = vsel %vm204, %v195, 0
        %v212 = vsel %vm204, %v196, 0
        %v215 = vsel %vm204, %v197, 0
        %217 = vmatpush.bf16.msra.mxu0 0
        %218 = vmatpush.bf16.msra.mxu0 0
        %219 = vmatpush.bf16.msra.mxu0 0
        %220 = vmatpush.bf16.msra.mxu0 0
        %221 = vmatpush.bf16.msra.mxu0 0
        %222 = vmatpush.bf16.msra.mxu0 0
        %223 = vmatpush.bf16.msra.mxu0 0
        %224 = vmatpush.bf16.msra.mxu0 %v202
        %225 = vmatmul.bf16.gmra.mxu0 %v206
        %v226 = vpop.f32.mrf.mxu0
        %v227 = vadd.f32 0.0, %v226
        %v228 = vpop.f32.mrf.mxu0
        %v229 = vadd.f32 0.0, %v228
        %230 = vmatmul.bf16.gmra.mxu0 %v209
        %v231 = vpop.f32.mrf.mxu0
        %v232 = vadd.f32 0.0, %v231
        %v233 = vpop.f32.mrf.mxu0
        %v234 = vadd.f32 0.0, %v233
        %235 = vmatmul.bf16.gmra.mxu0 %v212
        %v236 = vpop.f32.mrf.mxu0
        %v237 = vadd.f32 0.0, %v236
        %v238 = vpop.f32.mrf.mxu0
        %v239 = vadd.f32 0.0, %v238
        %240 = vmatmul.bf16.gmra.mxu0 %v215
        %v241 = vpop.f32.mrf.mxu0
        %v242 = vadd.f32 0.0, %v241
        %v243 = vpop.f32.mrf.mxu0
        %v244 = vadd.f32 0.0, %v243
        %245 = vdwg.mxu0
        %v246 = vmax.f32 %v227, 0.0
        %v247 = vmax.f32 %v229, 0.0
        %v248 = vmax.f32 %v232, 0.0
        %v249 = vmax.f32 %v234, 0.0
        %v250 = vmax.f32 %v237, 0.0
        %v251 = vmax.f32 %v239, 0.0
        %v252 = vmax.f32 %v242, 0.0
        %v253 = vmax.f32 %v244, 0.0
        %254 = vst [vmem:[%s158] sm:$0xff] %v246
        %255 = vst [vmem:[%s158 + $0x8] sm:$0xff] %v247
        %256 = vst [vmem:[%s158 + $0x10] sm:$0xff] %v248
        %257 = vst [vmem:[%s158 + $0x18] sm:$0xff] %v249
        %258 = vst [vmem:[%s158 + $0x20] sm:$0xff] %v250
        %259 = vst [vmem:[%s158 + $0x28] sm:$0xff] %v251
        %260 = vst [vmem:[%s158 + $0x30] sm:$0xff] %v252
        %261 = vst [vmem:[%s158 + $0x38] sm:$0xff] %v253
        %s262 = sand.u32 %s87, 1
        %s263 = scalar_lea.sflag [#allocation3], %s262
        %s264 = sand.u32 %s87, 1
        %s265 = smul.addr %s264, 64
        %s266 = scalar_lea.vmem [#allocation2], %s265
        // Predicated region
        $region29: #{_graph_conv_apply.1} parent=27 // pred_check
          %p267 = pneg %p97
        $region30: #{_graph_conv_apply.1} parent=27 // pred_check_branch
          %269 = sbr.rel (%p267) target = $region32
        $region31: #{_graph_conv_apply.1} parent=27 // pred_region
          %271 = vsyncadd %s263, 0
          %s272 = smul.addr %s20, 8
          %s273 = sadd.s32 %s21, %s272
          %s274 = smul.addr %s273, 8
          %s275 = scalar_lea.hbm %s2, %s274
          %s276 = sshll.u32 %s266, 4
          %s277 = int_to_ptr.vmem [resolvable:$true] %s276
          %s278 = sshll.u32 %s275, 4
          %s279 = int_to_ptr.hbm [resolvable:$true] %s278
          %284 = dma.vmem_to_hbm [thread:$0]  %s277, 1024, %s279, %s263, 128, 128, 8
        $region32: #{_graph_conv_apply.1} parent=27 // pred_fallthru
          _
      $region28: #{_graph_conv_apply.1} parent=5 // pred_fallthru
        _
      %p285 = scmp.le.s32.totalorder 2, %s11
      // Predicated region
      $region33: #{_graph_conv_apply.1} parent=5 // pred_check
        %p286 = pneg %p285
      $region34: #{_graph_conv_apply.1} parent=5 // pred_check_branch
        %288 = sbr.rel (%p286) target = $region36
      $region35: #{_graph_conv_apply.1} parent=5 // pred_region
        %s289 = ssub.s32 %s11, 2
        // Predicated region
        $region37: #{_graph_conv_apply.1} parent=35 // pred_check
          %p290 = pneg %p103
        $region38: #{_graph_conv_apply.1} parent=35 // pred_check_branch
          %292 = sbr.rel (%p290) target = $region40
        $region39: #{_graph_conv_apply.1} parent=35 // pred_region
          %s293 = sand.u32 %s88, 1
          %s294 = scalar_lea.sflag [#allocation3], %s293
          %s295 = sand.u32 %s88, 1
          %s296 = smul.addr %s295, 64
          %s297 = scalar_lea.vmem [#allocation2], %s296
          %299 = dma.done %s294, 1024
        $region40: #{_graph_conv_apply.1} parent=35 // pred_fallthru
          _
      $region36: #{_graph_conv_apply.1} parent=5 // pred_fallthru
        _
    $region6: #{_graph_conv_apply.1} parent=1 // loop_footer
      %s15 = sadd.s32 1, %s11
    $region7: #{_graph_conv_apply.1} parent=1 // loop_footer_branch
      %10 = sbr.rel target = $region3
    $region8: #{_graph_conv_apply.1} parent=1 // loop_exit
      _
    %300 = vsyncpa [#allocation3], 1
    %s301 = scalar_lea.sflag [#allocation3], 1
    %302 = vsyncpa %s301, 1

</llo_original>
